<compile_context>
chip_gen: v5e
topology: v5e:2x2
jax: 0.10.0
libtpu: 0.0.40
codegen_flags: <defaults>
</compile_context>

<pallas_src>
import functools
import math

import jax
import jax.numpy as jnp
from jax import lax
from jax.experimental import pallas as pl
from jax.experimental.pallas import tpu as pltpu


def coord_lateral_kernel(alphas_ref, x_ref, colmask_ref, rowmask_ref,
                         w1_ref, cb1_ref, w2_ref, cb2_ref, o_ref, var_ref,
                         *, W, Cinp, Coutp, L1, L2):
    """One (row-tile, batch) grid step.

    x_ref:    (1, 1, Cinp, LE)       haloed input tile (LE = (TH+4)*W), channel padded
    colmask:  (2, LE)                lane validity for dw = -1 / +1 (column masks)
    rowmask:  (1, 1, L1)             1.0 where the extended row is inside [0, H)
    w1/w2:    (3, Coutp, 3*C)        per-dh fused weight slabs, dw-major x channel
    cb1:      (1, Coutp, L1)         coord bias + conv bias, layer 1 rows (L1=(TH+2)*W)
    cb2:      (1, Coutp, L2)         coord bias + conv bias, layer 2 rows (L2=TH*W)
    o_ref:    (1, 1, Coutp, L2)
    var_ref:  (3*Cmax, LE) VMEM      scratch holding the three dw variants of the layer
    """
    f32 = jnp.float32
    a1 = alphas_ref[0]
    a2 = alphas_ref[1]
    cdt = var_ref.dtype

    def conv3x3(h, C, w_ref, bias, Lout):
        # h: (C, Lin) f32 activation (already PReLU'd / row-masked).
        Lin = h.shape[1]
        mask_l = colmask_ref[0:1, :Lin]        # column c >= 1     (valid for dw = -1)
        mask_r = colmask_ref[1:2, :Lin]        # column c <= W - 2 (valid for dw = +1)
        # Three dw variants, built once (2 rolls + 2 mask muls total). The single wrapped
        # lane of each +/-1 roll always lands on a masked column, so no wrap invariants.
        var_ref[pl.ds(0 * C, C), pl.ds(0, Lin)] = (jnp.roll(h, 1, axis=1) * mask_l).astype(cdt)
        var_ref[pl.ds(1 * C, C), pl.ds(0, Lin)] = h.astype(cdt)
        var_ref[pl.ds(2 * C, C), pl.ds(0, Lin)] = (jnp.roll(h, -1, axis=1) * mask_r).astype(cdt)
        acc = bias                             # (Coutp, Lout) f32
        for t, dh in enumerate((-1, 0, 1)):    # static row offsets -> static lane slices
            taps = var_ref[pl.ds(0, 3 * C), pl.ds((1 + dh) * W, Lout)]
            acc = acc + jnp.dot(w_ref[t], taps, preferred_element_type=f32)
        return acc

    # ---- PReLU -> CoordConv 1 (coords folded into cb1); rows 1..TH+2 of the halo -------
    x = x_ref[0, 0]                                    # (Cinp, LE) f32
    h1 = jnp.where(x > 0, x, a1 * x)
    y1 = conv3x3(h1, Cinp, w1_ref, cb1_ref[0], L1)     # (Coutp, L1) f32

    # ---- PReLU -> CoordConv 2; out-of-image rows must act as zero padding --------------
    h2 = rowmask_ref[0] * jnp.where(y1 > 0, y1, a2 * y1)
    y2 = conv3x3(h2, Coutp, w2_ref, cb2_ref[0], L2)    # (Coutp, L2) f32

    o_ref[0, 0] = y2.astype(o_ref.dtype)


def coord_lateral_block(x, params, *, block_h=None, compute_dtype=jnp.bfloat16,
                        vmem_limit_bytes=48 * 1024 * 1024):
    """x: (B, Cin, H, W) f32 NCHW. Returns (B, Cout, H, W) f32."""
    f32 = jnp.float32
    B, Cin, H, W = x.shape
    if H < 2 or W < 2:
        raise ValueError("CoordConv coordinate maps need H >= 2 and W >= 2.")
    w1, b1 = params["w1"].astype(f32), params["b1"].astype(f32)
    w2, b2 = params["w2"].astype(f32), params["b2"].astype(f32)
    Cout = w1.shape[0]

    def rup(v, m):
        return ((v + m - 1) // m) * m

    Cinp = rup(Cin, 8)                 # sublane-dense channel counts
    Coutp = rup(Cout, 8)
    Cmax = max(Cinp, Coutp)

    # ---- tile-height heuristic: 128-lane-aligned output tiles under a VMEM byte budget --
    bpe = jnp.dtype(compute_dtype).itemsize
    if block_h is None:
        m = 128 // math.gcd(W, 128)                # rows per 128-lane multiple
        target_rows = max(1, 2048 // max(W, 1))    # ~2k output lanes per tile
        TH = min(H, max(m, (target_rows // m) * m))

        def vmem_est(th):
            le, l1, l2 = (th + 4) * W, (th + 2) * W, th * W
            tiles = 2 * 4 * (Cinp * le + Coutp * l1 + Coutp * l2 + l1 + Coutp * l2)
            weights = 2 * bpe * (3 * Coutp * 3 * Cinp + 3 * Coutp * 3 * Coutp)
            scratch = bpe * 3 * Cmax * le
            live = 4 * 3 * Coutp * l1              # y1 / h2 / y2-sized live intermediates
            masks = 2 * 2 * 4 * le
            return tiles + weights + scratch + live + masks

        budget = int(0.75 * vmem_limit_bytes)
        while TH > m and vmem_est(TH) > budget:
            TH = max(m, TH - m)
    else:
        TH = max(1, min(block_h, H))

    n_t = -(-H // TH)                  # number of row tiles
    H_pad = n_t * TH
    LE = (TH + 4) * W                  # haloed activation lanes (layer-1 input rows)
    L1 = (TH + 2) * W                  # layer-1 output / layer-2 input lanes
    L2 = TH * W                        # layer-2 output lanes

    # ---- coordinate maps and folded coordinate bias (includes conv bias) ----------------
    xs = 2.0 * jnp.arange(H, dtype=f32) / (H - 1) - 1.0     # varies along H (dim 2)
    ys = 2.0 * jnp.arange(W, dtype=f32) / (W - 1) - 1.0     # varies along W (dim 3)
    coords = jnp.stack([jnp.broadcast_to(xs[:, None], (H, W)),
                        jnp.broadcast_to(ys[None, :], (H, W))])[None]       # (1,2,H,W)

    def conv_same(v, w):
        return lax.conv_general_dilated(
            v, w, (1, 1), ((1, 1), (1, 1)),
            dimension_numbers=("NCHW", "OIHW", "NCHW"))

    cb1 = conv_same(coords, w1[:, Cin:Cin + 2])[0] + b1[:, None, None]      # (Cout,H,W)
    cb2 = conv_same(coords, w2[:, Cout:Cout + 2])[0] + b2[:, None, None]    # (Cout,H,W)

    # ---- fused per-dh weight slabs (coord columns dropped), channel padded --------------
    # w_f[kh, o, kw*Cpad + c] = w[o, c, kh, kw]; matches the [dw=-1 ; dw=0 ; dw=+1] variant
    # ordering along the contraction axis inside the kernel.
    def fuse_w(w, cin, cinp):
        wp = jnp.zeros((Coutp, cinp, 3, 3), f32).at[:Cout, :cin].set(w[:, :cin])
        return jnp.transpose(wp, (2, 0, 3, 1)).reshape(3, Coutp, 3 * cinp)

    w1f = fuse_w(w1, Cin, Cinp).astype(compute_dtype)       # (3, Coutp, 3*Cinp)
    w2f = fuse_w(w2, Cout, Coutp).astype(compute_dtype)     # (3, Coutp, 3*Coutp)

    # ---- haloed input tiles (B, n_t, Cinp, LE); zero rows act as conv-1 zero padding ----
    xzp = jnp.zeros((B, Cinp, H_pad + 4, W), f32).at[:, :Cin, 2:2 + H, :].set(
        x.astype(f32))
    x_ext = jnp.stack([xzp[:, :, i * TH: i * TH + TH + 4, :] for i in range(n_t)], axis=1)
    x_ext = x_ext.reshape(B, n_t, Cinp, LE)

    # ---- per-tile coord-bias maps (fetched once per tile thanks to batch-innermost grid) -
    cb1p = jnp.zeros((Coutp, H_pad + 4, W), f32).at[:Cout, 2:2 + H, :].set(cb1)
    cb1_t = jnp.stack([cb1p[:, i * TH + 1: i * TH + TH + 3, :] for i in range(n_t)], axis=0)
    cb1_t = cb1_t.reshape(n_t, Coutp, L1)

    cb2p = jnp.zeros((Coutp, H_pad, W), f32).at[:Cout, :H, :].set(cb2)
    cb2_t = jnp.transpose(cb2p.reshape(Coutp, n_t, TH, W),
                          (1, 0, 2, 3)).reshape(n_t, Coutp, L2)

    # ---- masks (precomputed; no iota / div / mod in the kernel) -------------------------
    g = jnp.arange(n_t)[:, None] * TH - 1 + jnp.arange(TH + 2)[None, :]     # global rows
    rowmask = ((g >= 0) & (g < H)).astype(f32)                              # (n_t, TH+2)
    rowmask_t = jnp.broadcast_to(rowmask[:, None, :, None],
                                 (n_t, 1, TH + 2, W)).reshape(n_t, 1, L1)

    c = jnp.arange(LE, dtype=jnp.int32) % W
    colmask = jnp.stack([(c >= 1).astype(f32),            # valid lanes for dw = -1
                         (c <= W - 2).astype(f32)])       # valid lanes for dw = +1

    alphas = jnp.stack([jnp.asarray(params["a1"], f32).reshape(()),
                        jnp.asarray(params["a2"], f32).reshape(())])

    # ---- pallas call ---------------------------------------------------------------------
    kernel = functools.partial(coord_lateral_kernel, W=W,
                               Cinp=Cinp, Coutp=Coutp, L1=L1, L2=L2)

    out = pl.pallas_call(
        kernel,
        out_shape=jax.ShapeDtypeStruct((B, n_t, Coutp, L2), f32),
        grid=(n_t, B),   # batch innermost: i-indexed blocks are revisited, not re-DMA'd
        in_specs=[
            pl.BlockSpec(memory_space=pltpu.MemorySpace.SMEM),                # alphas
            pl.BlockSpec((1, 1, Cinp, LE), lambda i, b: (b, i, 0, 0)),        # x_ext
            pl.BlockSpec((2, LE), lambda i, b: (0, 0)),                       # colmask
            pl.BlockSpec((1, 1, L1), lambda i, b: (i, 0, 0)),                 # rowmask
            pl.BlockSpec((3, Coutp, 3 * Cinp), lambda i, b: (0, 0, 0)),       # w1f
            pl.BlockSpec((1, Coutp, L1), lambda i, b: (i, 0, 0)),             # cb1_t
            pl.BlockSpec((3, Coutp, 3 * Coutp), lambda i, b: (0, 0, 0)),      # w2f
            pl.BlockSpec((1, Coutp, L2), lambda i, b: (i, 0, 0)),             # cb2_t
        ],
        out_specs=pl.BlockSpec((1, 1, Coutp, L2), lambda i, b: (b, i, 0, 0)),
        scratch_shapes=[pltpu.VMEM((3 * Cmax, LE), compute_dtype)],
        compiler_params=pltpu.CompilerParams(
            dimension_semantics=("parallel", "parallel"),
            vmem_limit_bytes=vmem_limit_bytes),
    )(alphas, x_ext, colmask, rowmask_t, w1f, cb1_t, w2f, cb2_t)

    # (B, n_t, Coutp, TH*W) -> (B, Cout, H, W)
    out = jnp.transpose(out.reshape(B, n_t, Coutp, TH, W),
                        (0, 2, 1, 3, 4)).reshape(B, Coutp, H_pad, W)
    return out[:, :Cout, :H, :]


def reference(x, params):
    """Pure-JAX reference reproducing the PyTorch forward."""
    def prelu(v, a):
        return jnp.where(v > 0, v, a * v)

    def add_coords(v):
        B, _, H, W = v.shape
        xx = jnp.broadcast_to(
            (2.0 * jnp.arange(H) / (H - 1) - 1.0)[None, None, :, None],
            (B, 1, H, W)).astype(v.dtype)
        yy = jnp.broadcast_to(
            (2.0 * jnp.arange(W) / (W - 1) - 1.0)[None, None, None, :],
            (B, 1, H, W)).astype(v.dtype)
        return jnp.concatenate([v, xx, yy], axis=1)

    def conv(v, w, b):
        y = lax.conv_general_dilated(
            v, w, window_strides=(1, 1), padding=((1, 1), (1, 1)),
            dimension_numbers=("NCHW", "OIHW", "NCHW"))
        return y + b[None, :, None, None]

    h = prelu(x, params["a1"])
    h = conv(add_coords(h), params["w1"], params["b1"])
    h = prelu(h, params["a2"])
    h = conv(add_coords(h), params["w2"], params["b2"])
    return h


def init_params(key, in_ch, out_ch):
    k1, k2, k3, k4 = jax.random.split(key, 4)
    return {
        # nn.Conv2d(in_ch + 2, out_ch, 3, padding=1)
        "w1": jax.random.normal(k1, (out_ch, in_ch + 2, 3, 3), jnp.float32) * 0.1,
        "b1": jax.random.normal(k2, (out_ch,), jnp.float32) * 0.05,
        # nn.Conv2d(out_ch + 2, out_ch, 3, padding=1)
        "w2": jax.random.normal(k3, (out_ch, out_ch + 2, 3, 3), jnp.float32) * 0.1,
        "b2": jax.random.normal(k4, (out_ch,), jnp.float32) * 0.05,
        # nn.PReLU() default init = 0.25 (single shared parameter each)
        "a1": jnp.float32(0.25),
        "a2": jnp.float32(0.25),
    }


if __name__ == "__main__":
    B, Cin, Cout, H, W = 2, 4, 8, 16, 16

    key = jax.random.PRNGKey(0)
    kx, kp = jax.random.split(key)
    x = jax.random.normal(kx, (B, Cin, H, W), jnp.float32)
    params = init_params(kp, Cin, Cout)

    ref = jax.block_until_ready(reference(x, params))

    # Exactness check: f32 MXU operands, block_h=8 exercises the multi-row-tile (haloed)
    # path with grid = (2 row tiles, 2 batches).
    out_f32 = jax.block_until_ready(
        coord_lateral_block(x, params, block_h=8, compute_dtype=jnp.float32))
    assert out_f32.shape == (B, Cout, H, W)
    err32 = float(jnp.max(jnp.abs(out_f32 - ref)))
    assert jnp.allclose(out_f32, ref, atol=1e-3, rtol=1e-3), err32

    # Default fast path: auto tile size, bf16 MXU operands (full-rate MXU on v5e/v6e/v7x).
    out_bf = jax.block_until_ready(coord_lateral_block(x, params))
    assert out_bf.shape == (B, Cout, H, W)
    errbf = float(jnp.max(jnp.abs(out_bf - ref)))
    assert jnp.allclose(out_bf, ref, atol=5e-2, rtol=5e-2), errbf

    print("KERNEL_OK")
</pallas_src>

<mosaic_0001>
module attributes {stable_mosaic.version = 11 : i64} {
  func.func @coord_lateral_kernel(%arg0: i32, %arg1: i32, %arg2: memref<2xf32, #tpu.memory_space<smem>>, %arg3: memref<1x1x8x192xf32, #tpu.memory_space<vmem>>, %arg4: memref<2x192xf32, #tpu.memory_space<vmem>>, %arg5: memref<1x1x160xf32, #tpu.memory_space<vmem>>, %arg6: memref<3x8x24xf32, #tpu.memory_space<vmem>>, %arg7: memref<1x8x160xf32, #tpu.memory_space<vmem>>, %arg8: memref<3x8x24xf32, #tpu.memory_space<vmem>>, %arg9: memref<1x8x128xf32, #tpu.memory_space<vmem>>, %arg10: memref<1x1x8x128xf32, #tpu.memory_space<vmem>>, %arg11: memref<24x192xf32, #tpu.memory_space<vmem>>) attributes {dimension_semantics = [#tpu.dimension_semantics<parallel>, #tpu.dimension_semantics<parallel>], iteration_bounds = array<i64: 2, 2>, scalar_prefetch = 0 : i64, scratch_operands = 1 : i64, tpu.core_type = #tpu.core_type<tc>, window_params = [{transform_indices = @transform_0, window_bounds = array<i64: 2>}, {transform_indices = @transform_1, window_bounds = array<i64: 1, 1, 8, 192>}, {pipeline_mode = #tpu.pipeline_mode<synchronous>, transform_indices = @transform_2, window_bounds = array<i64: 2, 192>}, {transform_indices = @transform_3, window_bounds = array<i64: 1, 1, 160>}, {pipeline_mode = #tpu.pipeline_mode<synchronous>, transform_indices = @transform_4, window_bounds = array<i64: 3, 8, 24>}, {transform_indices = @transform_5, window_bounds = array<i64: 1, 8, 160>}, {pipeline_mode = #tpu.pipeline_mode<synchronous>, transform_indices = @transform_6, window_bounds = array<i64: 3, 8, 24>}, {transform_indices = @transform_7, window_bounds = array<i64: 1, 8, 128>}, {transform_indices = @transform_8, window_bounds = array<i64: 1, 1, 8, 128>}]} {
    %c0 = arith.constant 0 : index
    %0 = memref.load %arg2[%c0] : memref<2xf32, #tpu.memory_space<smem>>
    %c1 = arith.constant 1 : index
    %1 = memref.load %arg2[%c1] : memref<2xf32, #tpu.memory_space<smem>>
    %c0_0 = arith.constant 0 : index
    %c0_1 = arith.constant 0 : index
    %c0_2 = arith.constant 0 : index
    %c0_3 = arith.constant 0 : index
    %2 = vector.load %arg3[%c0_0, %c0_1, %c0_2, %c0_3] : memref<1x1x8x192xf32, #tpu.memory_space<vmem>>, vector<1x1x8x192xf32>
    %3 = vector.shape_cast %2 : vector<1x1x8x192xf32> to vector<8x192xf32>
    %cst = arith.constant 0.000000e+00 : f32
    %4 = vector.broadcast %cst : f32 to vector<8x192xf32>
    %5 = arith.cmpf ogt, %3, %4 : vector<8x192xf32>
    %6 = vector.broadcast %0 : f32 to vector<8x192xf32>
    %7 = arith.mulf %6, %3 : vector<8x192xf32>
    %8 = arith.select %5, %3, %7 : vector<8x192xi1>, vector<8x192xf32>
    %c0_4 = arith.constant 0 : index
    %c0_5 = arith.constant 0 : index
    %c0_6 = arith.constant 0 : index
    %9 = vector.load %arg7[%c0_4, %c0_5, %c0_6] : memref<1x8x160xf32, #tpu.memory_space<vmem>>, vector<1x8x160xf32>
    %10 = vector.shape_cast %9 : vector<1x8x160xf32> to vector<8x160xf32>
    %c0_7 = arith.constant 0 : index
    %c0_8 = arith.constant 0 : index
    %11 = vector.load %arg4[%c0_7, %c0_8] : memref<2x192xf32, #tpu.memory_space<vmem>>, vector<1x192xf32>
    %c1_9 = arith.constant 1 : index
    %c0_10 = arith.constant 0 : index
    %12 = vector.load %arg4[%c1_9, %c0_10] : memref<2x192xf32, #tpu.memory_space<vmem>>, vector<1x192xf32>
    %13 = vector.extract_strided_slice %8 {offsets = [0, 191], sizes = [8, 1], strides = [1, 1]} : vector<8x192xf32> to vector<8x1xf32>
    %14 = vector.extract_strided_slice %8 {offsets = [0, 0], sizes = [8, 191], strides = [1, 1]} : vector<8x192xf32> to vector<8x191xf32>
    %15 = tpu.concatenate %13, %14 in 1 : vector<8x1xf32>, vector<8x191xf32> -> vector<8x192xf32>
    %16 = vector.broadcast %11 : vector<1x192xf32> to vector<8x192xf32>
    %17 = arith.mulf %15, %16 : vector<8x192xf32>
    %c0_11 = arith.constant 0 : index
    %c0_12 = arith.constant 0 : index
    %18 = vector.load %arg11[%c0_11, %c0_12] : memref<24x192xf32, #tpu.memory_space<vmem>>, vector<8x192xf32>
    tpu.vector_store %arg11[%c0_11, %c0_12], %17 {strides = array<i32>} : memref<24x192xf32, #tpu.memory_space<vmem>>, vector<8x192xf32>,
    %c8 = arith.constant 8 : index
    %c0_13 = arith.constant 0 : index
    %19 = vector.load %arg11[%c8, %c0_13] : memref<24x192xf32, #tpu.memory_space<vmem>>, vector<8x192xf32>
    tpu.vector_store %arg11[%c8, %c0_13], %8 {strides = array<i32>} : memref<24x192xf32, #tpu.memory_space<vmem>>, vector<8x192xf32>,
    %20 = vector.extract_strided_slice %8 {offsets = [0, 1], sizes = [8, 191], strides = [1, 1]} : vector<8x192xf32> to vector<8x191xf32>
    %21 = vector.extract_strided_slice %8 {offsets = [0, 0], sizes = [8, 1], strides = [1, 1]} : vector<8x192xf32> to vector<8x1xf32>
    %22 = tpu.concatenate %20, %21 in 1 : vector<8x191xf32>, vector<8x1xf32> -> vector<8x192xf32>
    %23 = vector.broadcast %12 : vector<1x192xf32> to vector<8x192xf32>
    %24 = arith.mulf %22, %23 : vector<8x192xf32>
    %c16 = arith.constant 16 : index
    %c0_14 = arith.constant 0 : index
    %25 = vector.load %arg11[%c16, %c0_14] : memref<24x192xf32, #tpu.memory_space<vmem>>, vector<8x192xf32>
    tpu.vector_store %arg11[%c16, %c0_14], %24 {strides = array<i32>} : memref<24x192xf32, #tpu.memory_space<vmem>>, vector<8x192xf32>,
    %c0_15 = arith.constant 0 : index
    %c0_16 = arith.constant 0 : index
    %26 = vector.load %arg11[%c0_15, %c0_16] : memref<24x192xf32, #tpu.memory_space<vmem>>, vector<24x160xf32>
    %c0_17 = arith.constant 0 : index
    %c0_18 = arith.constant 0 : index
    %c0_19 = arith.constant 0 : index
    %27 = vector.load %arg6[%c0_17, %c0_18, %c0_19] : memref<3x8x24xf32, #tpu.memory_space<vmem>>, vector<1x8x24xf32>
    %28 = vector.shape_cast %27 : vector<1x8x24xf32> to vector<8x24xf32>
    %cst_20 = arith.constant dense<0.000000e+00> : vector<8x160xf32>
    %29 = tpu.matmul %28, %26, %cst_20 {dimension_numbers = #tpu.dot_dimension_numbers<[1], [0], [0], [1], [0, 0, 1, 1], [], []>} : vector<8x24xf32>, vector<24x160xf32>, vector<8x160xf32> -> vector<8x160xf32>
    %30 = arith.addf %10, %29 : vector<8x160xf32>
    %c0_21 = arith.constant 0 : index
    %c16_22 = arith.constant 16 : index
    %31 = vector.load %arg11[%c0_21, %c16_22] : memref<24x192xf32, #tpu.memory_space<vmem>>, vector<24x160xf32>
    %c1_23 = arith.constant 1 : index
    %c0_24 = arith.constant 0 : index
    %c0_25 = arith.constant 0 : index
    %32 = vector.load %arg6[%c1_23, %c0_24, %c0_25] : memref<3x8x24xf32, #tpu.memory_space<vmem>>, vector<1x8x24xf32>
    %33 = vector.shape_cast %32 : vector<1x8x24xf32> to vector<8x24xf32>
    %cst_26 = arith.constant dense<0.000000e+00> : vector<8x160xf32>
    %34 = tpu.matmul %33, %31, %cst_26 {dimension_numbers = #tpu.dot_dimension_numbers<[1], [0], [0], [1], [0, 0, 1, 1], [], []>} : vector<8x24xf32>, vector<24x160xf32>, vector<8x160xf32> -> vector<8x160xf32>
    %35 = arith.addf %30, %34 : vector<8x160xf32>
    %c0_27 = arith.constant 0 : index
    %c32 = arith.constant 32 : index
    %36 = vector.load %arg11[%c0_27, %c32] : memref<24x192xf32, #tpu.memory_space<vmem>>, vector<24x160xf32>
    %c2 = arith.constant 2 : index
    %c0_28 = arith.constant 0 : index
    %c0_29 = arith.constant 0 : index
    %37 = vector.load %arg6[%c2, %c0_28, %c0_29] : memref<3x8x24xf32, #tpu.memory_space<vmem>>, vector<1x8x24xf32>
    %38 = vector.shape_cast %37 : vector<1x8x24xf32> to vector<8x24xf32>
    %cst_30 = arith.constant dense<0.000000e+00> : vector<8x160xf32>
    %39 = tpu.matmul %38, %36, %cst_30 {dimension_numbers = #tpu.dot_dimension_numbers<[1], [0], [0], [1], [0, 0, 1, 1], [], []>} : vector<8x24xf32>, vector<24x160xf32>, vector<8x160xf32> -> vector<8x160xf32>
    %40 = arith.addf %35, %39 : vector<8x160xf32>
    %c0_31 = arith.constant 0 : index
    %c0_32 = arith.constant 0 : index
    %c0_33 = arith.constant 0 : index
    %41 = vector.load %arg5[%c0_31, %c0_32, %c0_33] : memref<1x1x160xf32, #tpu.memory_space<vmem>>, vector<1x1x160xf32>
    %42 = vector.shape_cast %41 : vector<1x1x160xf32> to vector<1x160xf32>
    %cst_34 = arith.constant 0.000000e+00 : f32
    %43 = vector.broadcast %cst_34 : f32 to vector<8x160xf32>
    %44 = arith.cmpf ogt, %40, %43 : vector<8x160xf32>
    %45 = vector.broadcast %1 : f32 to vector<8x160xf32>
    %46 = arith.mulf %45, %40 : vector<8x160xf32>
    %47 = arith.select %44, %40, %46 : vector<8x160xi1>, vector<8x160xf32>
    %48 = vector.broadcast %42 : vector<1x160xf32> to vector<8x160xf32>
    %49 = arith.mulf %48, %47 : vector<8x160xf32>
    %c0_35 = arith.constant 0 : index
    %c0_36 = arith.constant 0 : index
    %c0_37 = arith.constant 0 : index
    %50 = vector.load %arg9[%c0_35, %c0_36, %c0_37] : memref<1x8x128xf32, #tpu.memory_space<vmem>>, vector<1x8x128xf32>
    %51 = vector.shape_cast %50 : vector<1x8x128xf32> to vector<8x128xf32>
    %c0_38 = arith.constant 0 : index
    %c0_39 = arith.constant 0 : index
    %52 = vector.load %arg4[%c0_38, %c0_39] : memref<2x192xf32, #tpu.memory_space<vmem>>, vector<1x160xf32>
    %c1_40 = arith.constant 1 : index
    %c0_41 = arith.constant 0 : index
    %53 = vector.load %arg4[%c1_40, %c0_41] : memref<2x192xf32, #tpu.memory_space<vmem>>, vector<1x160xf32>
    %54 = vector.extract_strided_slice %49 {offsets = [0, 159], sizes = [8, 1], strides = [1, 1]} : vector<8x160xf32> to vector<8x1xf32>
    %55 = vector.extract_strided_slice %49 {offsets = [0, 0], sizes = [8, 159], strides = [1, 1]} : vector<8x160xf32> to vector<8x159xf32>
    %56 = tpu.concatenate %54, %55 in 1 : vector<8x1xf32>, vector<8x159xf32> -> vector<8x160xf32>
    %57 = vector.broadcast %52 : vector<1x160xf32> to vector<8x160xf32>
    %58 = arith.mulf %56, %57 : vector<8x160xf32>
    %c0_42 = arith.constant 0 : index
    %c0_43 = arith.constant 0 : index
    %59 = vector.load %arg11[%c0_42, %c0_43] : memref<24x192xf32, #tpu.memory_space<vmem>>, vector<8x160xf32>
    tpu.vector_store %arg11[%c0_42, %c0_43], %58 {strides = array<i32>} : memref<24x192xf32, #tpu.memory_space<vmem>>, vector<8x160xf32>,
    %c8_44 = arith.constant 8 : index
    %c0_45 = arith.constant 0 : index
    %60 = vector.load %arg11[%c8_44, %c0_45] : memref<24x192xf32, #tpu.memory_space<vmem>>, vector<8x160xf32>
    tpu.vector_store %arg11[%c8_44, %c0_45], %49 {strides = array<i32>} : memref<24x192xf32, #tpu.memory_space<vmem>>, vector<8x160xf32>,
    %61 = vector.extract_strided_slice %49 {offsets = [0, 1], sizes = [8, 159], strides = [1, 1]} : vector<8x160xf32> to vector<8x159xf32>
    %62 = vector.extract_strided_slice %49 {offsets = [0, 0], sizes = [8, 1], strides = [1, 1]} : vector<8x160xf32> to vector<8x1xf32>
    %63 = tpu.concatenate %61, %62 in 1 : vector<8x159xf32>, vector<8x1xf32> -> vector<8x160xf32>
    %64 = vector.broadcast %53 : vector<1x160xf32> to vector<8x160xf32>
    %65 = arith.mulf %63, %64 : vector<8x160xf32>
    %c16_46 = arith.constant 16 : index
    %c0_47 = arith.constant 0 : index
    %66 = vector.load %arg11[%c16_46, %c0_47] : memref<24x192xf32, #tpu.memory_space<vmem>>, vector<8x160xf32>
    tpu.vector_store %arg11[%c16_46, %c0_47], %65 {strides = array<i32>} : memref<24x192xf32, #tpu.memory_space<vmem>>, vector<8x160xf32>,
    %c0_48 = arith.constant 0 : index
    %c0_49 = arith.constant 0 : index
    %67 = vector.load %arg11[%c0_48, %c0_49] : memref<24x192xf32, #tpu.memory_space<vmem>>, vector<24x128xf32>
    %c0_50 = arith.constant 0 : index
    %c0_51 = arith.constant 0 : index
    %c0_52 = arith.constant 0 : index
    %68 = vector.load %arg8[%c0_50, %c0_51, %c0_52] : memref<3x8x24xf32, #tpu.memory_space<vmem>>, vector<1x8x24xf32>
    %69 = vector.shape_cast %68 : vector<1x8x24xf32> to vector<8x24xf32>
    %cst_53 = arith.constant dense<0.000000e+00> : vector<8x128xf32>
    %70 = tpu.matmul %69, %67, %cst_53 {dimension_numbers = #tpu.dot_dimension_numbers<[1], [0], [0], [1], [0, 0, 1, 1], [], []>} : vector<8x24xf32>, vector<24x128xf32>, vector<8x128xf32> -> vector<8x128xf32>
    %71 = arith.addf %51, %70 : vector<8x128xf32>
    %c0_54 = arith.constant 0 : index
    %c16_55 = arith.constant 16 : index
    %72 = vector.load %arg11[%c0_54, %c16_55] : memref<24x192xf32, #tpu.memory_space<vmem>>, vector<24x128xf32>
    %c1_56 = arith.constant 1 : index
    %c0_57 = arith.constant 0 : index
    %c0_58 = arith.constant 0 : index
    %73 = vector.load %arg8[%c1_56, %c0_57, %c0_58] : memref<3x8x24xf32, #tpu.memory_space<vmem>>, vector<1x8x24xf32>
    %74 = vector.shape_cast %73 : vector<1x8x24xf32> to vector<8x24xf32>
    %cst_59 = arith.constant dense<0.000000e+00> : vector<8x128xf32>
    %75 = tpu.matmul %74, %72, %cst_59 {dimension_numbers = #tpu.dot_dimension_numbers<[1], [0], [0], [1], [0, 0, 1, 1], [], []>} : vector<8x24xf32>, vector<24x128xf32>, vector<8x128xf32> -> vector<8x128xf32>
    %76 = arith.addf %71, %75 : vector<8x128xf32>
    %c0_60 = arith.constant 0 : index
    %c32_61 = arith.constant 32 : index
    %77 = vector.load %arg11[%c0_60, %c32_61] : memref<24x192xf32, #tpu.memory_space<vmem>>, vector<24x128xf32>
    %c2_62 = arith.constant 2 : index
    %c0_63 = arith.constant 0 : index
    %c0_64 = arith.constant 0 : index
    %78 = vector.load %arg8[%c2_62, %c0_63, %c0_64] : memref<3x8x24xf32, #tpu.memory_space<vmem>>, vector<1x8x24xf32>
    %79 = vector.shape_cast %78 : vector<1x8x24xf32> to vector<8x24xf32>
    %cst_65 = arith.constant dense<0.000000e+00> : vector<8x128xf32>
    %80 = tpu.matmul %79, %77, %cst_65 {dimension_numbers = #tpu.dot_dimension_numbers<[1], [0], [0], [1], [0, 0, 1, 1], [], []>} : vector<8x24xf32>, vector<24x128xf32>, vector<8x128xf32> -> vector<8x128xf32>
    %81 = arith.addf %76, %80 : vector<8x128xf32>
    %c0_66 = arith.constant 0 : index
    %c0_67 = arith.constant 0 : index
    %c0_68 = arith.constant 0 : index
    %c0_69 = arith.constant 0 : index
    %82 = vector.load %arg10[%c0_66, %c0_67, %c0_68, %c0_69] : memref<1x1x8x128xf32, #tpu.memory_space<vmem>>, vector<1x1x8x128xf32>
    %83 = vector.shape_cast %82 : vector<1x1x8x128xf32> to vector<8x128xf32>
    %84 = vector.shape_cast %81 : vector<8x128xf32> to vector<1x1x8x128xf32>
    tpu.vector_store %arg10[%c0_66, %c0_67, %c0_68, %c0_69], %84 {strides = array<i32>} : memref<1x1x8x128xf32, #tpu.memory_space<vmem>>, vector<1x1x8x128xf32>,
    return
  }
  func.func @transform_0(%arg0: i32, %arg1: i32) -> i32 {
    %c0_i32 = arith.constant 0 : i32
    %c0_i32_0 = arith.constant 0 : i32
    return %c0_i32 : i32
  }
  func.func @transform_1(%arg0: i32, %arg1: i32) -> (i32, i32, i32, i32) {
    %c0_i32 = arith.constant 0 : i32
    %c0_i32_0 = arith.constant 0 : i32
    %c0_i32_1 = arith.constant 0 : i32
    return %arg1, %arg0, %c0_i32, %c0_i32_0 : i32, i32, i32, i32
  }
  func.func @transform_2(%arg0: i32, %arg1: i32) -> (i32, i32) {
    %c0_i32 = arith.constant 0 : i32
    %c0_i32_0 = arith.constant 0 : i32
    %c0_i32_1 = arith.constant 0 : i32
    return %c0_i32, %c0_i32_0 : i32, i32
  }
  func.func @transform_3(%arg0: i32, %arg1: i32) -> (i32, i32, i32) {
    %c0_i32 = arith.constant 0 : i32
    %c0_i32_0 = arith.constant 0 : i32
    %c0_i32_1 = arith.constant 0 : i32
    return %arg0, %c0_i32, %c0_i32_0 : i32, i32, i32
  }
  func.func @transform_4(%arg0: i32, %arg1: i32) -> (i32, i32, i32) {
    %c0_i32 = arith.constant 0 : i32
    %c0_i32_0 = arith.constant 0 : i32
    %c0_i32_1 = arith.constant 0 : i32
    %c0_i32_2 = arith.constant 0 : i32
    return %c0_i32, %c0_i32_0, %c0_i32_1 : i32, i32, i32
  }
  func.func @transform_5(%arg0: i32, %arg1: i32) -> (i32, i32, i32) {
    %c0_i32 = arith.constant 0 : i32
    %c0_i32_0 = arith.constant 0 : i32
    %c0_i32_1 = arith.constant 0 : i32
    return %arg0, %c0_i32, %c0_i32_0 : i32, i32, i32
  }
  func.func @transform_6(%arg0: i32, %arg1: i32) -> (i32, i32, i32) {
    %c0_i32 = arith.constant 0 : i32
    %c0_i32_0 = arith.constant 0 : i32
    %c0_i32_1 = arith.constant 0 : i32
    %c0_i32_2 = arith.constant 0 : i32
    return %c0_i32, %c0_i32_0, %c0_i32_1 : i32, i32, i32
  }
  func.func @transform_7(%arg0: i32, %arg1: i32) -> (i32, i32, i32) {
    %c0_i32 = arith.constant 0 : i32
    %c0_i32_0 = arith.constant 0 : i32
    %c0_i32_1 = arith.constant 0 : i32
    return %arg0, %c0_i32, %c0_i32_0 : i32, i32, i32
  }
  func.func @transform_8(%arg0: i32, %arg1: i32) -> (i32, i32, i32, i32) {
    %c0_i32 = arith.constant 0 : i32
    %c0_i32_0 = arith.constant 0 : i32
    %c0_i32_1 = arith.constant 0 : i32
    return %arg1, %arg0, %c0_i32, %c0_i32_0 : i32, i32, i32, i32
  }
}

</mosaic_0001>

<llo_original>
// kernel: tpu_custom_call.1
$region0: #{tpu_custom_call.1}
  #allocation0 [shape = 'u32[]', space=smem, size = 0x4, offset = 0x4, fixed_abs, tag = 'smem constant byte address 0x4 - core index']
  #allocation1 [shape = 'u32[72,128]{1,0:T(1,128)}', space=vmem, size = 0x9000, scoped, tag = 'internal scratch']
  #allocation2 [shape = 'f32[24,192]{1,0:T(8,128)}', space=vmem, size = 0x6000, scoped, tag = 'scratch operand']
  %s0 = inlined_call_operand.hbm [shape: f32[2], index: 0, kind: input, shape index: {}]
  %s1 = inlined_call_operand.hbm [shape: f32[2,2,8,192], index: 1, kind: input, shape index: {}]
  %s2 = inlined_call_operand.hbm [shape: f32[2,192], index: 2, kind: input, shape index: {}]
  %s3 = inlined_call_operand.hbm [shape: f32[2,1,160], index: 3, kind: input, shape index: {}]
  %s4 = inlined_call_operand.hbm [shape: f32[3,8,24], index: 4, kind: input, shape index: {}]
  %s5 = inlined_call_operand.hbm [shape: f32[2,8,160], index: 5, kind: input, shape index: {}]
  %s6 = inlined_call_operand.hbm [shape: f32[3,8,24], index: 6, kind: input, shape index: {}]
  %s7 = inlined_call_operand.hbm [shape: f32[2,8,128], index: 7, kind: input, shape index: {}]
  %s8 = inlined_call_operand.hbm [shape: f32[2,2,8,128], index: 8, kind: output, shape index: {}]
  %s9 = sld [smem:[#allocation0]]
  $region97: #{tpu_custom_call.1} parent=0
    _
  %s11 = ssub.s32 1, %s9
  %s12 = scalar_select 0, %s11, %s9
  $region1: #{tpu_custom_call.1} parent=0
    #allocation3 [shape = 'u8[512]{0}', space=smem, size = 0x200, scoped, tag = 'input window, operand 0, single buffered']
    #allocation4 [shape = 's32[2]{0}', space=sflag, size = 0x8, scoped, tag = 'scoped memory for tpu_custom_call.1']
    #allocation5 [shape = 's32[2]{0}', space=sflag, size = 0x8, scoped, tag = 'scoped memory for tpu_custom_call.1']
    #allocation6 [shape = 's32[2]{0}', space=sflag, size = 0x8, scoped, tag = 'scoped memory for tpu_custom_call.1']
    #allocation7 [shape = 'u8[16384]{0}', space=vmem, size = 0x4000, scoped, tag = 'input window, operand 1']
    #allocation8 [shape = 'u8[2048]{0}', space=vmem, size = 0x800, scoped, tag = 'input window, operand 2, single buffered']
    #allocation9 [shape = 's32[1]{0}', space=sflag, size = 0x4, scoped, tag = 'scoped memory for tpu_custom_call.1']
    #allocation10 [shape = 'u8[2048]{0}', space=vmem, size = 0x800, scoped, tag = 'input window, operand 3']
    #allocation11 [shape = 'u8[12288]{0}', space=vmem, size = 0x3000, scoped, tag = 'input window, operand 4, single buffered']
    #allocation12 [shape = 'u8[16384]{0}', space=vmem, size = 0x4000, scoped, tag = 'input window, operand 5']
    #allocation13 [shape = 's32[2]{0}', space=sflag, size = 0x8, scoped, tag = 'scoped memory for tpu_custom_call.1']
    #allocation14 [shape = 'u8[12288]{0}', space=vmem, size = 0x3000, scoped, tag = 'input window, operand 6, single buffered']
    #allocation15 [shape = 'u8[8192]{0}', space=vmem, size = 0x2000, scoped, tag = 'input window, operand 7']
    #allocation16 [shape = 's32[2]{0}', space=sflag, size = 0x8, scoped, tag = 'scoped memory for tpu_custom_call.1']
    #allocation17 [shape = 'u8[8192]{0}', space=vmem, size = 0x2000, scoped, tag = 'output window, operand 0']
    %13 = vsyncpa [#allocation6], 0
    %14 = vsyncpa [#allocation4], 0
    %s15 = scalar_lea.sflag [#allocation4], 1
    %16 = vsyncpa %s15, 0
    %17 = vsyncpa [#allocation9], 0
    %18 = vsyncpa [#allocation13], 0
    %s19 = scalar_lea.sflag [#allocation13], 1
    %20 = vsyncpa %s19, 0
    %21 = vsyncpa [#allocation16], 0
    %s22 = scalar_lea.sflag [#allocation16], 1
    %23 = vsyncpa %s22, 0
    %24 = vsyncpa [#allocation5], 0
    %s25 = scalar_lea.sflag [#allocation5], 1
    %26 = vsyncpa %s25, 0
    loop: start=0, step=1, limit=6
    $region2: #{tpu_custom_call.1} parent=1 // loop_pre_header
      _
    $region3: #{tpu_custom_call.1} parent=1 // loop_header
      %s28 = sphi 0, %s32
      %p29 = scmp.ge.s32.totalorder %s28, 6
      %s35 = sphi 0, %s47
      %s36 = sphi 0, %s43
      %s37 = sphi 0, %s35
      %s38 = sphi 0, %s36
      %s39 = sphi 0, %s37
      %s40 = sphi 0, %s38
      %s48 = sphi 0, %s48
      %s50 = sphi 0, %s48
      %s51 = sphi 0, %s50
      %s65 = sphi 0, %s51
      %s73 = sphi 0, %s75
      %s76 = sphi 0, %s73
      %s77 = sphi 0, %s76
      %s93 = sphi 0, %s77
      %s97 = sphi 0, %s97
      %s99 = sphi 0, %s97
      %s100 = sphi 0, %s99
      %s114 = sphi 0, %s100
      %s120 = sphi 0, %s122
      %s123 = sphi 0, %s120
      %s124 = sphi 0, %s123
      %s140 = sphi 0, %s124
      %s144 = sphi 0, %s144
      %s146 = sphi 0, %s144
      %s147 = sphi 0, %s146
      %s161 = sphi 0, %s147
      %s167 = sphi 0, %s169
      %s170 = sphi 0, %s167
      %s171 = sphi 0, %s170
      %s187 = sphi 0, %s171
      %s191 = sphi 0, %s191
      %s193 = sphi 0, %s191
      %s194 = sphi 0, %s193
      %s208 = sphi 0, %s194
      %s214 = sphi 0, %s216
      %s217 = sphi 0, %s214
      %s218 = sphi 0, %s217
      %s234 = sphi 0, %s218
      %s242 = sphi 0, %s244
      %s245 = sphi 0, %s242
      %s246 = sphi 0, %s245
      %s262 = sphi 0, %s246
    $region4: #{tpu_custom_call.1} parent=1 // loop_header_branch
      %31 = sbr.rel (%p29) target = $region8
    $region5: #{tpu_custom_call.1} parent=1 // loop_body
      %s33 = ssub.s32 %s28, 1
      %s34 = ssub.s32 %s28, 2
      %s41 = sadd.s32 1, %s36
      %p42 = scmp.ge.s32.totalorder %s41, 2
      %s43 = scalar_select %p42, 0, %s41
      %s44 = sadd.s32 1, %s35
      %s45 = scalar_select %p42, %s44, %s35
      %p46 = scmp.ge.s32.totalorder %s45, 2
      %s47 = scalar_select %p46, 0, %s45
      %s49 = sadd.s32 %s48, 1
      %p52 = scmp.eq.s32.totalorder %s28, 3
      %p53 = scmp.ne.s32.totalorder %s48, %s50
      %p54 = scmp.eq.s32.totalorder %s28, 0
      %p55 = por %p53, %p54
      %p56 = scmp.ne.s32.totalorder %s48, %s50
      %p57 = scmp.eq.s32.totalorder %s33, 3
      %p58 = por %p56, %p57
      %p59 = scmp.ne.s32.totalorder %s50, %s51
      %p60 = scmp.eq.s32.totalorder %s33, 0
      %p61 = por %p59, %p60
      %p62 = scmp.ne.s32.totalorder %s50, %s51
      %p63 = scmp.eq.s32.totalorder %s34, 3
      %p64 = por %p62, %p63
      %p66 = scmp.ne.s32.totalorder %s51, %s65
      %p67 = scmp.eq.s32.totalorder %s34, 0
      %p68 = por %p66, %p67
      %s69 = ssub.s32 %s36, %s43
      %s70 = ssub.s32 %s35, %s47
      %s71 = sor.u32 %s69, %s70
      %p72 = scmp.eq.s32.totalorder %s71, 0
      %s74 = sadd.s32 %s73, 1
      %s75 = scalar_select %p72, %s73, %s74
      %p78 = pneg %p72
      %p79 = scmp.eq.s32.totalorder %s28, 3
      %p80 = por %p78, %p79
      %p81 = scmp.ne.s32.totalorder %s73, %s76
      %p82 = scmp.eq.s32.totalorder %s28, 0
      %p83 = por %p81, %p82
      %p84 = scmp.ne.s32.totalorder %s73, %s76
      %p85 = scmp.eq.s32.totalorder %s33, 3
      %p86 = por %p84, %p85
      %p87 = scmp.ne.s32.totalorder %s76, %s77
      %p88 = scmp.eq.s32.totalorder %s33, 0
      %p89 = por %p87, %p88
      %p90 = scmp.ne.s32.totalorder %s76, %s77
      %p91 = scmp.eq.s32.totalorder %s34, 3
      %p92 = por %p90, %p91
      %p94 = scmp.ne.s32.totalorder %s77, %s93
      %p95 = scmp.eq.s32.totalorder %s34, 0
      %p96 = por %p94, %p95
      %s98 = sadd.s32 %s97, 1
      %p101 = scmp.eq.s32.totalorder %s28, 3
      %p102 = scmp.ne.s32.totalorder %s97, %s99
      %p103 = scmp.eq.s32.totalorder %s28, 0
      %p104 = por %p102, %p103
      %p105 = scmp.ne.s32.totalorder %s97, %s99
      %p106 = scmp.eq.s32.totalorder %s33, 3
      %p107 = por %p105, %p106
      %p108 = scmp.ne.s32.totalorder %s99, %s100
      %p109 = scmp.eq.s32.totalorder %s33, 0
      %p110 = por %p108, %p109
      %p111 = scmp.ne.s32.totalorder %s99, %s100
      %p112 = scmp.eq.s32.totalorder %s34, 3
      %p113 = por %p111, %p112
      %p115 = scmp.ne.s32.totalorder %s100, %s114
      %p116 = scmp.eq.s32.totalorder %s34, 0
      %p117 = por %p115, %p116
      %s118 = ssub.s32 %s35, %s47
      %p119 = scmp.eq.s32.totalorder %s118, 0
      %s121 = sadd.s32 %s120, 1
      %s122 = scalar_select %p119, %s120, %s121
      %p125 = pneg %p119
      %p126 = scmp.eq.s32.totalorder %s28, 3
      %p127 = por %p125, %p126
      %p128 = scmp.ne.s32.totalorder %s120, %s123
      %p129 = scmp.eq.s32.totalorder %s28, 0
      %p130 = por %p128, %p129
      %p131 = scmp.ne.s32.totalorder %s120, %s123
      %p132 = scmp.eq.s32.totalorder %s33, 3
      %p133 = por %p131, %p132
      %p134 = scmp.ne.s32.totalorder %s123, %s124
      %p135 = scmp.eq.s32.totalorder %s33, 0
      %p136 = por %p134, %p135
      %p137 = scmp.ne.s32.totalorder %s123, %s124
      %p138 = scmp.eq.s32.totalorder %s34, 3
      %p139 = por %p137, %p138
      %p141 = scmp.ne.s32.totalorder %s124, %s140
      %p142 = scmp.eq.s32.totalorder %s34, 0
      %p143 = por %p141, %p142
      %s145 = sadd.s32 %s144, 1
      %p148 = scmp.eq.s32.totalorder %s28, 3
      %p149 = scmp.ne.s32.totalorder %s144, %s146
      %p150 = scmp.eq.s32.totalorder %s28, 0
      %p151 = por %p149, %p150
      %p152 = scmp.ne.s32.totalorder %s144, %s146
      %p153 = scmp.eq.s32.totalorder %s33, 3
      %p154 = por %p152, %p153
      %p155 = scmp.ne.s32.totalorder %s146, %s147
      %p156 = scmp.eq.s32.totalorder %s33, 0
      %p157 = por %p155, %p156
      %p158 = scmp.ne.s32.totalorder %s146, %s147
      %p159 = scmp.eq.s32.totalorder %s34, 3
      %p160 = por %p158, %p159
      %p162 = scmp.ne.s32.totalorder %s147, %s161
      %p163 = scmp.eq.s32.totalorder %s34, 0
      %p164 = por %p162, %p163
      %s165 = ssub.s32 %s35, %s47
      %p166 = scmp.eq.s32.totalorder %s165, 0
      %s168 = sadd.s32 %s167, 1
      %s169 = scalar_select %p166, %s167, %s168
      %p172 = pneg %p166
      %p173 = scmp.eq.s32.totalorder %s28, 3
      %p174 = por %p172, %p173
      %p175 = scmp.ne.s32.totalorder %s167, %s170
      %p176 = scmp.eq.s32.totalorder %s28, 0
      %p177 = por %p175, %p176
      %p178 = scmp.ne.s32.totalorder %s167, %s170
      %p179 = scmp.eq.s32.totalorder %s33, 3
      %p180 = por %p178, %p179
      %p181 = scmp.ne.s32.totalorder %s170, %s171
      %p182 = scmp.eq.s32.totalorder %s33, 0
      %p183 = por %p181, %p182
      %p184 = scmp.ne.s32.totalorder %s170, %s171
      %p185 = scmp.eq.s32.totalorder %s34, 3
      %p186 = por %p184, %p185
      %p188 = scmp.ne.s32.totalorder %s171, %s187
      %p189 = scmp.eq.s32.totalorder %s34, 0
      %p190 = por %p188, %p189
      %s192 = sadd.s32 %s191, 1
      %p195 = scmp.eq.s32.totalorder %s28, 3
      %p196 = scmp.ne.s32.totalorder %s191, %s193
      %p197 = scmp.eq.s32.totalorder %s28, 0
      %p198 = por %p196, %p197
      %p199 = scmp.ne.s32.totalorder %s191, %s193
      %p200 = scmp.eq.s32.totalorder %s33, 3
      %p201 = por %p199, %p200
      %p202 = scmp.ne.s32.totalorder %s193, %s194
      %p203 = scmp.eq.s32.totalorder %s33, 0
      %p204 = por %p202, %p203
      %p205 = scmp.ne.s32.totalorder %s193, %s194
      %p206 = scmp.eq.s32.totalorder %s34, 3
      %p207 = por %p205, %p206
      %p209 = scmp.ne.s32.totalorder %s194, %s208
      %p210 = scmp.eq.s32.totalorder %s34, 0
      %p211 = por %p209, %p210
      %s212 = ssub.s32 %s35, %s47
      %p213 = scmp.eq.s32.totalorder %s212, 0
      %s215 = sadd.s32 %s214, 1
      %s216 = scalar_select %p213, %s214, %s215
      %p219 = pneg %p213
      %p220 = scmp.eq.s32.totalorder %s28, 3
      %p221 = por %p219, %p220
      %p222 = scmp.ne.s32.totalorder %s214, %s217
      %p223 = scmp.eq.s32.totalorder %s28, 0
      %p224 = por %p222, %p223
      %p225 = scmp.ne.s32.totalorder %s214, %s217
      %p226 = scmp.eq.s32.totalorder %s33, 3
      %p227 = por %p225, %p226
      %p228 = scmp.ne.s32.totalorder %s217, %s218
      %p229 = scmp.eq.s32.totalorder %s33, 0
      %p230 = por %p228, %p229
      %p231 = scmp.ne.s32.totalorder %s217, %s218
      %p232 = scmp.eq.s32.totalorder %s34, 3
      %p233 = por %p231, %p232
      %p235 = scmp.ne.s32.totalorder %s218, %s234
      %p236 = scmp.eq.s32.totalorder %s34, 0
      %p237 = por %p235, %p236
      %s238 = ssub.s32 %s36, %s43
      %s239 = ssub.s32 %s35, %s47
      %s240 = sor.u32 %s238, %s239
      %p241 = scmp.eq.s32.totalorder %s240, 0
      %s243 = sadd.s32 %s242, 1
      %s244 = scalar_select %p241, %s242, %s243
      %p247 = pneg %p241
      %p248 = scmp.eq.s32.totalorder %s28, 3
      %p249 = por %p247, %p248
      %p250 = scmp.ne.s32.totalorder %s242, %s245
      %p251 = scmp.eq.s32.totalorder %s28, 0
      %p252 = por %p250, %p251
      %p253 = scmp.ne.s32.totalorder %s242, %s245
      %p254 = scmp.eq.s32.totalorder %s33, 3
      %p255 = por %p253, %p254
      %p256 = scmp.ne.s32.totalorder %s245, %s246
      %p257 = scmp.eq.s32.totalorder %s33, 0
      %p258 = por %p256, %p257
      %p259 = scmp.ne.s32.totalorder %s245, %s246
      %p260 = scmp.eq.s32.totalorder %s34, 3
      %p261 = por %p259, %p260
      %p263 = scmp.ne.s32.totalorder %s246, %s262
      %p264 = scmp.eq.s32.totalorder %s34, 0
      %p265 = por %p263, %p264
      %p266 = scmp.le.s32.totalorder 1, %s28
      %p267 = scmp.lt.s32.totalorder %s28, 5
      %p268 = pnand %p266, %p267
      %p269 = pneg %p268
      // Predicated region
      $region9: #{tpu_custom_call.1} parent=5 // pred_check
        _
      $region10: #{tpu_custom_call.1} parent=5 // pred_check_branch
        %271 = sbr.rel (%p268) target = $region12
      $region11: #{tpu_custom_call.1} parent=5 // pred_region
        %s272 = ssub.s32 %s28, 1
        // Predicated region
        $region13: #{tpu_custom_call.1} parent=11 // pred_check
          %p273 = pneg %p61
        $region14: #{tpu_custom_call.1} parent=11 // pred_check_branch
          %275 = sbr.rel (%p273) target = $region16
        $region15: #{tpu_custom_call.1} parent=11 // pred_region
          %277 = vsyncadd [#allocation6], 0
          %s279 = sshll.u32 %s0, 4
          %s280 = int_to_ptr.hbm [resolvable:$true] %s279
          %282 = dma.hbm_to_smem %s280, 16, [#allocation3], [#allocation6]
        $region16: #{tpu_custom_call.1} parent=11 // pred_fallthru
          _
        // Predicated region
        $region17: #{tpu_custom_call.1} parent=11 // pred_check
          %p283 = pneg %p110
        $region18: #{tpu_custom_call.1} parent=11 // pred_check_branch
          %285 = sbr.rel (%p283) target = $region20
        $region19: #{tpu_custom_call.1} parent=11 // pred_region
          %287 = vsyncadd [#allocation9], 0
          %s289 = sshll.u32 %s2, 4
          %s290 = int_to_ptr.hbm [resolvable:$true] %s289
          %s291 = sshll.u32 [#allocation8], 4
          %s292 = int_to_ptr.vmem [resolvable:$true] %s291
          %294 = dma.hbm_to_vmem [thread:$0]  %s290, 64, %s292, [#allocation9]
        $region20: #{tpu_custom_call.1} parent=11 // pred_fallthru
          _
        // Predicated region
        $region21: #{tpu_custom_call.1} parent=11 // pred_check
          %p295 = pneg %p157
        $region22: #{tpu_custom_call.1} parent=11 // pred_check_branch
          %297 = sbr.rel (%p295) target = $region24
        $region23: #{tpu_custom_call.1} parent=11 // pred_region
          %299 = vsyncadd [#allocation9], 0
          %s300 = sshll.u32 %s4, 4
          %s301 = int_to_ptr.hbm [resolvable:$true] %s300
          %s302 = sshll.u32 [#allocation11], 4
          %s303 = int_to_ptr.vmem [resolvable:$true] %s302
          %308 = dma.hbm_to_vmem [thread:$0]  %s301, 384, %s303, [#allocation9], 128, 128, 8
        $region24: #{tpu_custom_call.1} parent=11 // pred_fallthru
          _
        // Predicated region
        $region25: #{tpu_custom_call.1} parent=11 // pred_check
          %p309 = pneg %p204
        $region26: #{tpu_custom_call.1} parent=11 // pred_check_branch
          %311 = sbr.rel (%p309) target = $region28
        $region27: #{tpu_custom_call.1} parent=11 // pred_region
          %313 = vsyncadd [#allocation13], 0
          %s314 = sshll.u32 %s6, 4
          %s315 = int_to_ptr.hbm [resolvable:$true] %s314
          %s316 = sshll.u32 [#allocation14], 4
          %s317 = int_to_ptr.vmem [resolvable:$true] %s316
          %322 = dma.hbm_to_vmem [thread:$0]  %s315, 384, %s317, [#allocation13], 128, 128, 8
        $region28: #{tpu_custom_call.1} parent=11 // pred_fallthru
          _
      $region12: #{tpu_custom_call.1} parent=5 // pred_fallthru
        _
      %p323 = scmp.lt.s32.totalorder %s28, 4
      // Predicated region
      $region29: #{tpu_custom_call.1} parent=5 // pred_check
        %p324 = pneg %p323
      $region30: #{tpu_custom_call.1} parent=5 // pred_check_branch
        %326 = sbr.rel (%p324) target = $region32
      $region31: #{tpu_custom_call.1} parent=5 // pred_region
        // Predicated region
        $region33: #{tpu_custom_call.1} parent=31 // pred_check
          %p327 = pneg %p83
        $region34: #{tpu_custom_call.1} parent=31 // pred_check_branch
          %329 = sbr.rel (%p327) target = $region36
        $region35: #{tpu_custom_call.1} parent=31 // pred_region
          %s330 = sand.u32 %s28, 1
          %s331 = scalar_lea.sflag [#allocation4], %s330
          %s332 = sand.u32 %s73, 1
          %s333 = smul.addr %s332, 16
          %s334 = scalar_lea.vmem [#allocation7], %s333
          %336 = vsyncadd %s331, 0
          %s337 = smul.addr %s35, 2
          %s338 = smul.addr %s36, 4
          %s339 = sadd.s32 %s337, %s338
          %s340 = smul.addr %s339, 8
          %s341 = scalar_lea.hbm %s1, %s340
          %s343 = sshll.u32 %s341, 4
          %s344 = int_to_ptr.hbm [resolvable:$true] %s343
          %s345 = sshll.u32 %s334, 4
          %s346 = int_to_ptr.vmem [resolvable:$true] %s345
          %348 = dma.hbm_to_vmem [thread:$0]  %s344, 256, %s346, %s331
        $region36: #{tpu_custom_call.1} parent=31 // pred_fallthru
          _
        // Predicated region
        $region37: #{tpu_custom_call.1} parent=31 // pred_check
          %p349 = pneg %p130
        $region38: #{tpu_custom_call.1} parent=31 // pred_check_branch
          %351 = sbr.rel (%p349) target = $region40
        $region39: #{tpu_custom_call.1} parent=31 // pred_region
          %s352 = sand.u32 %s28, 1
          %s353 = scalar_lea.sflag [#allocation4], %s352
          %s354 = sand.u32 %s120, 1
          %s355 = smul.addr %s354, 2
          %s356 = scalar_lea.vmem [#allocation10], %s355
          %358 = vsyncadd %s353, 0
          %s359 = smul.addr %s35, 2
          %s360 = scalar_lea.hbm %s3, %s359
          %s362 = sshll.u32 %s360, 4
          %s363 = int_to_ptr.hbm [resolvable:$true] %s362
          %s364 = sshll.u32 %s356, 4
          %s365 = int_to_ptr.vmem [resolvable:$true] %s364
          %367 = dma.hbm_to_vmem [thread:$0]  %s363, 32, %s365, %s353
        $region40: #{tpu_custom_call.1} parent=31 // pred_fallthru
          _
        // Predicated region
        $region41: #{tpu_custom_call.1} parent=31 // pred_check
          %p368 = pneg %p177
        $region42: #{tpu_custom_call.1} parent=31 // pred_check_branch
          %370 = sbr.rel (%p368) target = $region44
        $region43: #{tpu_custom_call.1} parent=31 // pred_region
          %s371 = sand.u32 %s28, 1
          %s372 = scalar_lea.sflag [#allocation13], %s371
          %s373 = sand.u32 %s167, 1
          %s374 = smul.addr %s373, 16
          %s375 = scalar_lea.vmem [#allocation12], %s374
          %377 = vsyncadd %s372, 0
          %s378 = smul.addr %s35, 2
          %s379 = smul.addr %s378, 8
          %s380 = scalar_lea.hbm %s5, %s379
          %s382 = sshll.u32 %s380, 4
          %s383 = int_to_ptr.hbm [resolvable:$true] %s382
          %s384 = sshll.u32 %s375, 4
          %s385 = int_to_ptr.vmem [resolvable:$true] %s384
          %387 = dma.hbm_to_vmem [thread:$0]  %s383, 256, %s385, %s372
        $region44: #{tpu_custom_call.1} parent=31 // pred_fallthru
          _
        // Predicated region
        $region45: #{tpu_custom_call.1} parent=31 // pred_check
          %p388 = pneg %p224
        $region46: #{tpu_custom_call.1} parent=31 // pred_check_branch
          %390 = sbr.rel (%p388) target = $region48
        $region47: #{tpu_custom_call.1} parent=31 // pred_region
          %s391 = sand.u32 %s214, 1
          %s392 = scalar_lea.sflag [#allocation16], %s391
          %s393 = sand.u32 %s214, 1
          %s394 = smul.addr %s393, 8
          %s395 = scalar_lea.vmem [#allocation15], %s394
          %397 = vsyncadd %s392, 0
          %s398 = smul.addr %s35, 8
          %s399 = scalar_lea.hbm %s7, %s398
          %s401 = sshll.u32 %s399, 4
          %s402 = int_to_ptr.hbm [resolvable:$true] %s401
          %s403 = sshll.u32 %s395, 4
          %s404 = int_to_ptr.vmem [resolvable:$true] %s403
          %406 = dma.hbm_to_vmem [thread:$0]  %s402, 128, %s404, %s392
        $region48: #{tpu_custom_call.1} parent=31 // pred_fallthru
          _
      $region32: #{tpu_custom_call.1} parent=5 // pred_fallthru
        _
      %p407 = scmp.le.s32.totalorder 1, %s28
      %p408 = scmp.lt.s32.totalorder %s28, 5
      %p409 = pnand %p407, %p408
      %p410 = pneg %p409
      // Predicated region
      $region49: #{tpu_custom_call.1} parent=5 // pred_check
        _
      $region50: #{tpu_custom_call.1} parent=5 // pred_check_branch
        %412 = sbr.rel (%p409) target = $region52
      $region51: #{tpu_custom_call.1} parent=5 // pred_region
        %s413 = ssub.s32 %s28, 1
        // Predicated region
        $region53: #{tpu_custom_call.1} parent=51 // pred_check
          %p414 = pneg %p61
        $region54: #{tpu_custom_call.1} parent=51 // pred_check_branch
          %416 = sbr.rel (%p414) target = $region56
        $region55: #{tpu_custom_call.1} parent=51 // pred_region
          %418 = dma.done [#allocation6], 16
        $region56: #{tpu_custom_call.1} parent=51 // pred_fallthru
          _
        %s419 = sand.u32 %s33, 1
        %s420 = scalar_lea.sflag [#allocation4], %s419
        %s421 = sand.u32 %s76, 1
        %s422 = smul.addr %s421, 16
        %s423 = scalar_lea.vmem [#allocation7], %s422
        // Predicated region
        $region57: #{tpu_custom_call.1} parent=51 // pred_check
          %p424 = pneg %p89
        $region58: #{tpu_custom_call.1} parent=51 // pred_check_branch
          %426 = sbr.rel (%p424) target = $region60
        $region59: #{tpu_custom_call.1} parent=51 // pred_region
          %428 = dma.done %s420, 256
        $region60: #{tpu_custom_call.1} parent=51 // pred_fallthru
          _
        // Predicated region
        $region61: #{tpu_custom_call.1} parent=51 // pred_check
          %p429 = pneg %p110
        $region62: #{tpu_custom_call.1} parent=51 // pred_check_branch
          %431 = sbr.rel (%p429) target = $region64
        $region63: #{tpu_custom_call.1} parent=51 // pred_region
          %433 = dma.done [#allocation9], 64
        $region64: #{tpu_custom_call.1} parent=51 // pred_fallthru
          _
        %s434 = sand.u32 %s33, 1
        %s435 = scalar_lea.sflag [#allocation4], %s434
        %s436 = sand.u32 %s123, 1
        %s437 = smul.addr %s436, 2
        %s438 = scalar_lea.vmem [#allocation10], %s437
        // Predicated region
        $region65: #{tpu_custom_call.1} parent=51 // pred_check
          %p439 = pneg %p136
        $region66: #{tpu_custom_call.1} parent=51 // pred_check_branch
          %441 = sbr.rel (%p439) target = $region68
        $region67: #{tpu_custom_call.1} parent=51 // pred_region
          %443 = dma.done %s435, 32
        $region68: #{tpu_custom_call.1} parent=51 // pred_fallthru
          _
        // Predicated region
        $region69: #{tpu_custom_call.1} parent=51 // pred_check
          %p444 = pneg %p157
        $region70: #{tpu_custom_call.1} parent=51 // pred_check_branch
          %446 = sbr.rel (%p444) target = $region72
        $region71: #{tpu_custom_call.1} parent=51 // pred_region
          %448 = dma.done [#allocation9], 384
        $region72: #{tpu_custom_call.1} parent=51 // pred_fallthru
          _
        %s449 = sand.u32 %s33, 1
        %s450 = scalar_lea.sflag [#allocation13], %s449
        %s451 = sand.u32 %s170, 1
        %s452 = smul.addr %s451, 16
        %s453 = scalar_lea.vmem [#allocation12], %s452
        // Predicated region
        $region73: #{tpu_custom_call.1} parent=51 // pred_check
          %p454 = pneg %p183
        $region74: #{tpu_custom_call.1} parent=51 // pred_check_branch
          %456 = sbr.rel (%p454) target = $region76
        $region75: #{tpu_custom_call.1} parent=51 // pred_region
          %458 = dma.done %s450, 256
        $region76: #{tpu_custom_call.1} parent=51 // pred_fallthru
          _
        // Predicated region
        $region77: #{tpu_custom_call.1} parent=51 // pred_check
          %p459 = pneg %p204
        $region78: #{tpu_custom_call.1} parent=51 // pred_check_branch
          %461 = sbr.rel (%p459) target = $region80
        $region79: #{tpu_custom_call.1} parent=51 // pred_region
          %463 = dma.done [#allocation13], 384
        $region80: #{tpu_custom_call.1} parent=51 // pred_fallthru
          _
        %s464 = sand.u32 %s217, 1
        %s465 = scalar_lea.sflag [#allocation16], %s464
        %s466 = sand.u32 %s217, 1
        %s467 = smul.addr %s466, 8
        %s468 = scalar_lea.vmem [#allocation15], %s467
        // Predicated region
        $region81: #{tpu_custom_call.1} parent=51 // pred_check
          %p469 = pneg %p230
        $region82: #{tpu_custom_call.1} parent=51 // pred_check_branch
          %471 = sbr.rel (%p469) target = $region84
        $region83: #{tpu_custom_call.1} parent=51 // pred_region
          %473 = dma.done %s465, 128
        $region84: #{tpu_custom_call.1} parent=51 // pred_fallthru
          _
        %474 = sfence
        %p475 = pneg %p61
        %p476 = pneg %p58
        %s477 = sand.u32 %s33, 1
        %s478 = scalar_lea.sflag [#allocation4], %s477
        %s479 = sand.u32 %s76, 1
        %s480 = smul.addr %s479, 16
        %s481 = scalar_lea.vmem [#allocation7], %s480
        %p482 = pneg %p89
        %p483 = pneg %p86
        %p484 = pneg %p110
        %p485 = pneg %p107
        %s486 = sand.u32 %s33, 1
        %s487 = scalar_lea.sflag [#allocation4], %s486
        %s488 = sand.u32 %s123, 1
        %s489 = smul.addr %s488, 2
        %s490 = scalar_lea.vmem [#allocation10], %s489
        %p491 = pneg %p136
        %p492 = pneg %p133
        %p493 = pneg %p157
        %p494 = pneg %p154
        %s495 = sand.u32 %s33, 1
        %s496 = scalar_lea.sflag [#allocation13], %s495
        %s497 = sand.u32 %s170, 1
        %s498 = smul.addr %s497, 16
        %s499 = scalar_lea.vmem [#allocation12], %s498
        %p500 = pneg %p183
        %p501 = pneg %p180
        %p502 = pneg %p204
        %p503 = pneg %p201
        %s504 = sand.u32 %s217, 1
        %s505 = scalar_lea.sflag [#allocation16], %s504
        %s506 = sand.u32 %s217, 1
        %s507 = smul.addr %s506, 8
        %s508 = scalar_lea.vmem [#allocation15], %s507
        %p509 = pneg %p230
        %p510 = pneg %p227
        %p511 = pneg %p258
        %p512 = pneg %p255
        %s513 = sand.u32 %s245, 1
        %s514 = scalar_lea.sflag [#allocation5], %s513
        %s515 = sand.u32 %s245, 1
        %s516 = smul.addr %s515, 8
        %s517 = scalar_lea.vmem [#allocation17], %s516
        %s518 = sld [smem:[#allocation3]]
        %s519 = sld [smem:[#allocation3 + $0x1]]
        %v520 = vld [vmem:[%s423] sm:$0xff]
        %v521 = vld [vmem:[%s423 + $0x8] sm:$0xff]
        %vm522 = vcmp.gt.f32.partialorder %v520, 0.0
        %vm523 = vcmp.gt.f32.partialorder %v521, 0.0
        %v524 = vstv %s518
        %v525 = vmul.f32 %v524, %v520
        %v526 = vmul.f32 %v524, %v521
        %v527 = vsel %vm522, %v520, %v525
        %v528 = vsel %vm523, %v521, %v526
        %v529 = vld [vmem:[%s453] sm:$0xff]
        %v530 = vld [vmem:[%s453 + $0x8] sm:$0xff]
        %v531 = vld [vmem:[#allocation8] ss:$2 sm:$0x3]
        %s532 = scalar_lea.vmem [#allocation8], 1
        %v533 = vld [vmem:[%s532] ss:$2 sm:$0x3]
        %535 = vrot.lane.b32.xlu0 %v528, 65
        %v536 = vpop.permute.xlu0 %535
        %539 = vrot.lane.b32.xlu0 %v527, 1
        %v540 = vpop.permute.xlu0 %539
        %541 = vrot.lane.b32.xlu0 %v528, 1
        %v542 = vpop.permute.xlu0 %541
        %vm543 = vcmask 7168
        %v544 = vsel %vm543, %v540, %v542
        %v547 = vsel %vm543, %v536, %v540
        %v549 = vperm.slane %v531, 0
        %v550 = vperm.slane %v531, 1
        %v553 = vmul.f32 %v547, %v549
        %v554 = vmul.f32 %v544, %v550
        %555 = vst [vmem:[#allocation2] sm:$0xff] %v553
        %vm556 = vcmask 523264
        %557 = vst.msk [vmem:[#allocation2 + $0x8] sm:$0xff] %vm556, %v554
        %558 = vst [vmem:[#allocation2 + $0x10] sm:$0xff] %v527
        %559 = vst.msk [vmem:[#allocation2 + $0x18] sm:$0xff] %vm556, %v528
        %560 = vrot.lane.b32.xlu0 %v527, 127
        %v561 = vpop.permute.xlu0 %560
        %562 = vrot.lane.b32.xlu0 %v528, 127
        %v563 = vpop.permute.xlu0 %562
        %vm564 = vcmask 1039360
        %v565 = vsel %vm564, %v561, %v563
        %568 = vrot.lane.b32.xlu0 %v527, 63
        %v569 = vpop.permute.xlu0 %568
        %vm571 = vcmask 515072
        %v572 = vsel %vm571, %v563, %v569
        %v574 = vperm.slane %v533, 0
        %v575 = vperm.slane %v533, 1
        %v578 = vmul.f32 %v565, %v574
        %v579 = vmul.f32 %v572, %v575
        %580 = vst [vmem:[#allocation2 + $0x20] sm:$0xff] %v578
        %581 = vst.msk [vmem:[#allocation2 + $0x28] sm:$0xff] %vm556, %v579
        %v582 = vld [vmem:[#allocation2] sm:$0xff]
        %v583 = vld [vmem:[#allocation2 + $0x8] sm:$0xff]
        %v584 = vld [vmem:[#allocation2 + $0x10] sm:$0xff]
        %v585 = vld [vmem:[#allocation2 + $0x18] sm:$0xff]
        %v586 = vld [vmem:[#allocation2 + $0x20] sm:$0xff]
        %v587 = vld [vmem:[#allocation2 + $0x28] sm:$0xff]
        %v588 = vld [vmem:[#allocation11] sm:$0xff]
        %vm589 = vcmask 195584
        %v591 = vsel %vm589, %v588, 0
        %593 = vmatpush.msra.mxu0 0.0
        %594 = vmatpush.msra.mxu0 0.0
        %595 = vmatpush.msra.mxu0 0.0
        %596 = vmatpush.msra.mxu0 0.0
        %597 = vmatpush.msra.mxu0 0.0
        %598 = vmatpush.msra.mxu0 0.0
        %599 = vmatpush.msra.mxu0 0.0
        %600 = vmatpush.msra.mxu0 0.0
        %601 = vmatpush.msra.mxu0 0.0
        %602 = vmatpush.msra.mxu0 0.0
        %603 = vmatpush.msra.mxu0 0.0
        %604 = vmatpush.msra.mxu0 0.0
        %605 = vmatpush.msra.mxu0 0.0
        %606 = vmatpush.msra.mxu0 %v586
        %607 = vmatpush.msra.mxu0 %v584
        %608 = vmatpush.msra.mxu0 %v582
        %609 = vmatmul.f32.gmra.mxu0 %v591
        %v610 = vpop.f32.mrf.mxu0
        %v611 = vadd.f32 0.0, %v610
        %612 = vdwg.mxu0
        %613 = vmatpush.msra.mxu0 0.0
        %614 = vmatpush.msra.mxu0 0.0
        %615 = vmatpush.msra.mxu0 0.0
        %616 = vmatpush.msra.mxu0 0.0
        %617 = vmatpush.msra.mxu0 0.0
        %618 = vmatpush.msra.mxu0 0.0
        %619 = vmatpush.msra.mxu0 0.0
        %620 = vmatpush.msra.mxu0 0.0
        %621 = vmatpush.msra.mxu0 0.0
        %622 = vmatpush.msra.mxu0 0.0
        %623 = vmatpush.msra.mxu0 0.0
        %624 = vmatpush.msra.mxu0 0.0
        %625 = vmatpush.msra.mxu0 0.0
        %626 = vmatpush.msra.mxu0 %v587
        %627 = vmatpush.msra.mxu0 %v585
        %628 = vmatpush.msra.mxu0 %v583
        %629 = vmatmul.f32.gmra.mxu0 %v591
        %v630 = vpop.f32.mrf.mxu0
        %v631 = vadd.f32 0.0, %v630
        %632 = vdwg.mxu0
        %v633 = vadd.f32 %v529, %v611
        %v634 = vadd.f32 %v530, %v631
        %s635 = scalar_lea.vmem [#allocation11], 8
        %v636 = vld [vmem:[%s635] sm:$0xff]
        %643 = vrot.lane.b32.xlu0 %v582, 112
        %v644 = vpop.permute.xlu0 %643
        %645 = vrot.lane.b32.xlu0 %v583, 112
        %v646 = vpop.permute.xlu0 %645
        %647 = vrot.lane.b32.xlu0 %v584, 112
        %v648 = vpop.permute.xlu0 %647
        %649 = vrot.lane.b32.xlu0 %v585, 112
        %v650 = vpop.permute.xlu0 %649
        %651 = vrot.lane.b32.xlu0 %v586, 112
        %v652 = vpop.permute.xlu0 %651
        %653 = vrot.lane.b32.xlu0 %v587, 112
        %v654 = vpop.permute.xlu0 %653
        %vm655 = vcmask 916480
        %v656 = vsel %vm655, %v644, %v646
        %v657 = vsel %vm655, %v648, %v650
        %v658 = vsel %vm655, %v652, %v654
        %v666 = vsel %vm589, %v636, 0
        %668 = vmatpush.msra.mxu0 0.0
        %669 = vmatpush.msra.mxu0 0.0
        %670 = vmatpush.msra.mxu0 0.0
        %671 = vmatpush.msra.mxu0 0.0
        %672 = vmatpush.msra.mxu0 0.0
        %673 = vmatpush.msra.mxu0 0.0
        %674 = vmatpush.msra.mxu0 0.0
        %675 = vmatpush.msra.mxu0 0.0
        %676 = vmatpush.msra.mxu0 0.0
        %677 = vmatpush.msra.mxu0 0.0
        %678 = vmatpush.msra.mxu0 0.0
        %679 = vmatpush.msra.mxu0 0.0
        %680 = vmatpush.msra.mxu0 0.0
        %681 = vmatpush.msra.mxu0 %v658
        %682 = vmatpush.msra.mxu0 %v657
        %683 = vmatpush.msra.mxu0 %v656
        %684 = vmatmul.f32.gmra.mxu0 %v666
        %v685 = vpop.f32.mrf.mxu0
        %v686 = vadd.f32 0.0, %v685
        %687 = vdwg.mxu0
        %688 = vmatpush.msra.mxu0 0.0
        %689 = vmatpush.msra.mxu0 0.0
        %690 = vmatpush.msra.mxu0 0.0
        %691 = vmatpush.msra.mxu0 0.0
        %692 = vmatpush.msra.mxu0 0.0
        %693 = vmatpush.msra.mxu0 0.0
        %694 = vmatpush.msra.mxu0 0.0
        %695 = vmatpush.msra.mxu0 0.0
        %696 = vmatpush.msra.mxu0 0.0
        %697 = vmatpush.msra.mxu0 0.0
        %698 = vmatpush.msra.mxu0 0.0
        %699 = vmatpush.msra.mxu0 0.0
        %700 = vmatpush.msra.mxu0 0.0
        %701 = vmatpush.msra.mxu0 %v654
        %702 = vmatpush.msra.mxu0 %v650
        %703 = vmatpush.msra.mxu0 %v646
        %704 = vmatmul.f32.gmra.mxu0 %v666
        %v705 = vpop.f32.mrf.mxu0
        %v706 = vadd.f32 0.0, %v705
        %707 = vdwg.mxu0
        %v708 = vadd.f32 %v633, %v686
        %v709 = vadd.f32 %v634, %v706
        %s710 = scalar_lea.vmem [#allocation11], 16
        %v711 = vld [vmem:[%s710] sm:$0xff]
        %712 = vrot.lane.b32.xlu0 %v582, 96
        %v713 = vpop.permute.xlu0 %712
        %714 = vrot.lane.b32.xlu0 %v583, 96
        %v715 = vpop.permute.xlu0 %714
        %716 = vrot.lane.b32.xlu0 %v584, 96
        %v717 = vpop.permute.xlu0 %716
        %718 = vrot.lane.b32.xlu0 %v585, 96
        %v719 = vpop.permute.xlu0 %718
        %720 = vrot.lane.b32.xlu0 %v586, 96
        %v721 = vpop.permute.xlu0 %720
        %722 = vrot.lane.b32.xlu0 %v587, 96
        %v723 = vpop.permute.xlu0 %722
        %vm724 = vcmask 785408
        %v725 = vsel %vm724, %v713, %v715
        %v726 = vsel %vm724, %v717, %v719
        %v727 = vsel %vm724, %v721, %v723
        %v735 = vsel %vm589, %v711, 0
        %737 = vmatpush.msra.mxu0 0.0
        %738 = vmatpush.msra.mxu0 0.0
        %739 = vmatpush.msra.mxu0 0.0
        %740 = vmatpush.msra.mxu0 0.0
        %741 = vmatpush.msra.mxu0 0.0
        %742 = vmatpush.msra.mxu0 0.0
        %743 = vmatpush.msra.mxu0 0.0
        %744 = vmatpush.msra.mxu0 0.0
        %745 = vmatpush.msra.mxu0 0.0
        %746 = vmatpush.msra.mxu0 0.0
        %747 = vmatpush.msra.mxu0 0.0
        %748 = vmatpush.msra.mxu0 0.0
        %749 = vmatpush.msra.mxu0 0.0
        %750 = vmatpush.msra.mxu0 %v727
        %751 = vmatpush.msra.mxu0 %v726
        %752 = vmatpush.msra.mxu0 %v725
        %753 = vmatmul.f32.gmra.mxu0 %v735
        %v754 = vpop.f32.mrf.mxu0
        %v755 = vadd.f32 0.0, %v754
        %756 = vdwg.mxu0
        %757 = vmatpush.msra.mxu0 0.0
        %758 = vmatpush.msra.mxu0 0.0
        %759 = vmatpush.msra.mxu0 0.0
        %760 = vmatpush.msra.mxu0 0.0
        %761 = vmatpush.msra.mxu0 0.0
        %762 = vmatpush.msra.mxu0 0.0
        %763 = vmatpush.msra.mxu0 0.0
        %764 = vmatpush.msra.mxu0 0.0
        %765 = vmatpush.msra.mxu0 0.0
        %766 = vmatpush.msra.mxu0 0.0
        %767 = vmatpush.msra.mxu0 0.0
        %768 = vmatpush.msra.mxu0 0.0
        %769 = vmatpush.msra.mxu0 0.0
        %770 = vmatpush.msra.mxu0 %v723
        %771 = vmatpush.msra.mxu0 %v719
        %772 = vmatpush.msra.mxu0 %v715
        %773 = vmatmul.f32.gmra.mxu0 %v735
        %v774 = vpop.f32.mrf.mxu0
        %v775 = vadd.f32 0.0, %v774
        %776 = vdwg.mxu0
        %v777 = vadd.f32 %v708, %v755
        %v778 = vadd.f32 %v709, %v775
        %v779 = vld [vmem:[%s438] sm:$0x3]
        %vm780 = vcmp.gt.f32.partialorder %v777, 0.0
        %vm781 = vcmp.gt.f32.partialorder %v778, 0.0
        %v782 = vstv %s519
        %v783 = vmul.f32 %v782, %v777
        %v784 = vmul.f32 %v782, %v778
        %v785 = vsel %vm780, %v777, %v783
        %v786 = vsel %vm781, %v778, %v784
        %v788 = vperm.slane %v779, 0
        %v789 = vperm.slane %v779, 1
        %v792 = vmul.f32 %v788, %v785
        %v793 = vmul.f32 %v789, %v786
        %v794 = vld [vmem:[%s468] sm:$0xff]
        %v795 = vld [vmem:[#allocation8] ss:$2 sm:$0x3]
        %v796 = vld [vmem:[%s532] ss:$2 sm:$0x3]
        %798 = vrot.lane.b32.xlu0 %v793, 97
        %v799 = vpop.permute.xlu0 %798
        %802 = vrot.lane.b32.xlu0 %v792, 1
        %v803 = vpop.permute.xlu0 %802
        %804 = vrot.lane.b32.xlu0 %v793, 1
        %v805 = vpop.permute.xlu0 %804
        %v806 = vsel %vm543, %v803, %v805
        %v809 = vsel %vm543, %v799, %v803
        %v811 = vperm.slane %v795, 0
        %v812 = vperm.slane %v795, 1
        %v815 = vmul.f32 %v809, %v811
        %v816 = vmul.f32 %v806, %v812
        %817 = vst [vmem:[#allocation2] sm:$0xff] %v815
        %vm818 = vcmask 261120
        %819 = vst.msk [vmem:[#allocation2 + $0x8] sm:$0xff] %vm818, %v816
        %820 = vst [vmem:[#allocation2 + $0x10] sm:$0xff] %v792
        %821 = vst.msk [vmem:[#allocation2 + $0x18] sm:$0xff] %vm818, %v793
        %822 = vrot.lane.b32.xlu0 %v792, 127
        %v823 = vpop.permute.xlu0 %822
        %824 = vrot.lane.b32.xlu0 %v793, 127
        %v825 = vpop.permute.xlu0 %824
        %v826 = vsel %vm564, %v823, %v825
        %829 = vrot.lane.b32.xlu0 %v792, 31
        %v830 = vpop.permute.xlu0 %829
        %vm832 = vcmask 252928
        %v833 = vsel %vm832, %v825, %v830
        %v835 = vperm.slane %v796, 0
        %v836 = vperm.slane %v796, 1
        %v839 = vmul.f32 %v826, %v835
        %v840 = vmul.f32 %v833, %v836
        %841 = vst [vmem:[#allocation2 + $0x20] sm:$0xff] %v839
        %842 = vst.msk [vmem:[#allocation2 + $0x28] sm:$0xff] %vm818, %v840
        %v843 = vld [vmem:[#allocation2] sm:$0xff]
        %v844 = vld [vmem:[#allocation2 + $0x10] sm:$0xff]
        %v845 = vld [vmem:[#allocation2 + $0x20] sm:$0xff]
        %v846 = vld [vmem:[#allocation14] sm:$0xff]
        %v848 = vsel %vm589, %v846, 0
        %850 = vmatpush.msra.mxu0 0.0
        %851 = vmatpush.msra.mxu0 0.0
        %852 = vmatpush.msra.mxu0 0.0
        %853 = vmatpush.msra.mxu0 0.0
        %854 = vmatpush.msra.mxu0 0.0
        %855 = vmatpush.msra.mxu0 0.0
        %856 = vmatpush.msra.mxu0 0.0
        %857 = vmatpush.msra.mxu0 0.0
        %858 = vmatpush.msra.mxu0 0.0
        %859 = vmatpush.msra.mxu0 0.0
        %860 = vmatpush.msra.mxu0 0.0
        %861 = vmatpush.msra.mxu0 0.0
        %862 = vmatpush.msra.mxu0 0.0
        %863 = vmatpush.msra.mxu0 %v845
        %864 = vmatpush.msra.mxu0 %v844
        %865 = vmatpush.msra.mxu0 %v843
        %866 = vmatmul.f32.gmra.mxu0 %v848
        %v867 = vpop.f32.mrf.mxu0
        %v868 = vadd.f32 0.0, %v867
        %869 = vdwg.mxu0
        %v870 = vadd.f32 %v794, %v868
        %v871 = vld [vmem:[#allocation2] sm:$0xff]
        %v872 = vld [vmem:[#allocation2 + $0x8] sm:$0xff]
        %v873 = vld [vmem:[#allocation2 + $0x10] sm:$0xff]
        %v874 = vld [vmem:[#allocation2 + $0x18] sm:$0xff]
        %v875 = vld [vmem:[#allocation2 + $0x20] sm:$0xff]
        %v876 = vld [vmem:[#allocation2 + $0x28] sm:$0xff]
        %s877 = scalar_lea.vmem [#allocation14], 8
        %v878 = vld [vmem:[%s877] sm:$0xff]
        %885 = vrot.lane.b32.xlu0 %v871, 112
        %v886 = vpop.permute.xlu0 %885
        %887 = vrot.lane.b32.xlu0 %v872, 112
        %v888 = vpop.permute.xlu0 %887
        %889 = vrot.lane.b32.xlu0 %v873, 112
        %v890 = vpop.permute.xlu0 %889
        %891 = vrot.lane.b32.xlu0 %v874, 112
        %v892 = vpop.permute.xlu0 %891
        %893 = vrot.lane.b32.xlu0 %v875, 112
        %v894 = vpop.permute.xlu0 %893
        %895 = vrot.lane.b32.xlu0 %v876, 112
        %v896 = vpop.permute.xlu0 %895
        %v897 = vsel %vm655, %v886, %v888
        %v898 = vsel %vm655, %v890, %v892
        %v899 = vsel %vm655, %v894, %v896
        %v904 = vsel %vm589, %v878, 0
        %906 = vmatpush.msra.mxu0 0.0
        %907 = vmatpush.msra.mxu0 0.0
        %908 = vmatpush.msra.mxu0 0.0
        %909 = vmatpush.msra.mxu0 0.0
        %910 = vmatpush.msra.mxu0 0.0
        %911 = vmatpush.msra.mxu0 0.0
        %912 = vmatpush.msra.mxu0 0.0
        %913 = vmatpush.msra.mxu0 0.0
        %914 = vmatpush.msra.mxu0 0.0
        %915 = vmatpush.msra.mxu0 0.0
        %916 = vmatpush.msra.mxu0 0.0
        %917 = vmatpush.msra.mxu0 0.0
        %918 = vmatpush.msra.mxu0 0.0
        %919 = vmatpush.msra.mxu0 %v899
        %920 = vmatpush.msra.mxu0 %v898
        %921 = vmatpush.msra.mxu0 %v897
        %922 = vmatmul.f32.gmra.mxu0 %v904
        %v923 = vpop.f32.mrf.mxu0
        %v924 = vadd.f32 0.0, %v923
        %925 = vdwg.mxu0
        %v926 = vadd.f32 %v870, %v924
        %s927 = scalar_lea.vmem [#allocation14], 16
        %v928 = vld [vmem:[%s927] sm:$0xff]
        %929 = vrot.lane.b32.xlu0 %v871, 96
        %v930 = vpop.permute.xlu0 %929
        %931 = vrot.lane.b32.xlu0 %v872, 96
        %v932 = vpop.permute.xlu0 %931
        %933 = vrot.lane.b32.xlu0 %v873, 96
        %v934 = vpop.permute.xlu0 %933
        %935 = vrot.lane.b32.xlu0 %v874, 96
        %v936 = vpop.permute.xlu0 %935
        %937 = vrot.lane.b32.xlu0 %v875, 96
        %v938 = vpop.permute.xlu0 %937
        %939 = vrot.lane.b32.xlu0 %v876, 96
        %v940 = vpop.permute.xlu0 %939
        %v941 = vsel %vm724, %v930, %v932
        %v942 = vsel %vm724, %v934, %v936
        %v943 = vsel %vm724, %v938, %v940
        %v948 = vsel %vm589, %v928, 0
        %950 = vmatpush.msra.mxu0 0.0
        %951 = vmatpush.msra.mxu0 0.0
        %952 = vmatpush.msra.mxu0 0.0
        %953 = vmatpush.msra.mxu0 0.0
        %954 = vmatpush.msra.mxu0 0.0
        %955 = vmatpush.msra.mxu0 0.0
        %956 = vmatpush.msra.mxu0 0.0
        %957 = vmatpush.msra.mxu0 0.0
        %958 = vmatpush.msra.mxu0 0.0
        %959 = vmatpush.msra.mxu0 0.0
        %960 = vmatpush.msra.mxu0 0.0
        %961 = vmatpush.msra.mxu0 0.0
        %962 = vmatpush.msra.mxu0 0.0
        %963 = vmatpush.msra.mxu0 %v943
        %964 = vmatpush.msra.mxu0 %v942
        %965 = vmatpush.msra.mxu0 %v941
        %966 = vmatmul.f32.gmra.mxu0 %v948
        %v967 = vpop.f32.mrf.mxu0
        %v968 = vadd.f32 0.0, %v967
        %969 = vdwg.mxu0
        %v970 = vadd.f32 %v926, %v968
        %971 = vst [vmem:[%s517] sm:$0xff] %v970
        %s972 = sand.u32 %s245, 1
        %s973 = scalar_lea.sflag [#allocation5], %s972
        %s974 = sand.u32 %s245, 1
        %s975 = smul.addr %s974, 8
        %s976 = scalar_lea.vmem [#allocation17], %s975
        // Predicated region
        $region85: #{tpu_custom_call.1} parent=51 // pred_check
          %p977 = pneg %p255
        $region86: #{tpu_custom_call.1} parent=51 // pred_check_branch
          %979 = sbr.rel (%p977) target = $region88
        $region87: #{tpu_custom_call.1} parent=51 // pred_region
          %981 = vsyncadd %s973, 0
          %s982 = smul.addr %s38, 2
          %s983 = sadd.s32 %s37, %s982
          %s984 = smul.addr %s983, 8
          %s985 = scalar_lea.hbm %s8, %s984
          %s987 = sshll.u32 %s976, 4
          %s988 = int_to_ptr.vmem [resolvable:$true] %s987
          %s989 = sshll.u32 %s985, 4
          %s990 = int_to_ptr.hbm [resolvable:$true] %s989
          %992 = dma.vmem_to_hbm [thread:$0]  %s988, 128, %s990, %s973
        $region88: #{tpu_custom_call.1} parent=51 // pred_fallthru
          _
      $region52: #{tpu_custom_call.1} parent=5 // pred_fallthru
        _
      %p993 = scmp.le.s32.totalorder 2, %s28
      // Predicated region
      $region89: #{tpu_custom_call.1} parent=5 // pred_check
        %p994 = pneg %p993
      $region90: #{tpu_custom_call.1} parent=5 // pred_check_branch
        %996 = sbr.rel (%p994) target = $region92
      $region91: #{tpu_custom_call.1} parent=5 // pred_region
        %s997 = ssub.s32 %s28, 2
        // Predicated region
        $region93: #{tpu_custom_call.1} parent=91 // pred_check
          %p998 = pneg %p261
        $region94: #{tpu_custom_call.1} parent=91 // pred_check_branch
          %1000 = sbr.rel (%p998) target = $region96
        $region95: #{tpu_custom_call.1} parent=91 // pred_region
          %s1001 = sand.u32 %s246, 1
          %s1002 = scalar_lea.sflag [#allocation5], %s1001
          %s1003 = sand.u32 %s246, 1
          %s1004 = smul.addr %s1003, 8
          %s1005 = scalar_lea.vmem [#allocation17], %s1004
          %1007 = dma.done %s1002, 128
        $region96: #{tpu_custom_call.1} parent=91 // pred_fallthru
          _
      $region92: #{tpu_custom_call.1} parent=5 // pred_fallthru
        _
    $region6: #{tpu_custom_call.1} parent=1 // loop_footer
      %s32 = sadd.s32 1, %s28
    $region7: #{tpu_custom_call.1} parent=1 // loop_footer_branch
      %27 = sbr.rel target = $region3
    $region8: #{tpu_custom_call.1} parent=1 // loop_exit
      _
    %1008 = vsyncpa [#allocation4], 1
    %s1009 = scalar_lea.sflag [#allocation4], 1
    %1010 = vsyncpa %s1009, 1
    %1011 = vsyncpa [#allocation9], 1
    %1012 = vsyncpa [#allocation13], 1
    %s1013 = scalar_lea.sflag [#allocation13], 1
    %1014 = vsyncpa %s1013, 1
    %1015 = vsyncpa [#allocation16], 1
    %s1016 = scalar_lea.sflag [#allocation16], 1
    %1017 = vsyncpa %s1016, 1
    %1018 = vsyncpa [#allocation5], 1
    %s1019 = scalar_lea.sflag [#allocation5], 1
    %1020 = vsyncpa %s1019, 1
    %1021 = vsyncpa [#allocation6], 1
    %s1022 = scalar_lea.sflag [#allocation6], 1
    %1023 = vsyncpa %s1022, 1

</llo_original>
